<compile_context>
chip_gen: v7x
topology: tpu7x:2x2x1
jax: 0.10.0
libtpu: 0.0.40
codegen_flags: <defaults>
</compile_context>

<pallas_src>
import functools

import jax
import jax.numpy as jnp
from jax.experimental import pallas as pl
from jax.experimental.pallas import tpu as pltpu


def _gradient_loss_kernel(x_ref, o_ref, *, W, L, P, tb, cs, bpc, penalty,
                          inv_dx, inv_dy, needs_mask):
    """Accumulate 0.5*(sum(pen(dx))/ndx + sum(pen(dy))/ndy) for one plane block."""
    c = pl.program_id(0)          # core (parallel) axis
    i = pl.program_id(1)          # streaming / reduction (arbitrary) axis

    @pl.when(i == 0)
    def _init():
        o_ref[...] = jnp.zeros_like(o_ref)

    # Global index of the first plane held by this *logical* block (the DMA'd
    # block index may have been clamped; invalid planes are masked below).
    base = (c * bpc + i) * tb

    # Static seam mask for dx (hoisted out of the chunk loop):
    # dx[j] = x[j+1] - x[j] is a valid horizontal diff iff (j+1) % W != 0.
    col = jax.lax.broadcasted_iota(jnp.int32, (1, L - 1), 1)
    dx_valid = ((col + 1) % W) != 0

    def chunk_sum(r0, acc):
        xc = x_ref[pl.ds(r0, cs), :]                       # (cs, L) rows = planes
        if needs_mask:
            row = jax.lax.broadcasted_iota(jnp.int32, (cs, 1), 0)
            valid = (base + r0 + row) < P                  # global plane index
            xc = jnp.where(valid, xc, jnp.zeros_like(xc))  # zero planes add 0
        xf = xc.astype(jnp.float32)

        dy = xf[:, W:] - xf[:, :-W]                        # (cs, L-W) vertical diffs
        dx = xf[:, 1:] - xf[:, :-1]                        # (cs, L-1) horizontal diffs
        if penalty == "l2":                                # |d|^2 == d*d
            vy = dy * dy
            vx = dx * dx
        else:                                              # torch: plain |.| otherwise
            vy = jnp.abs(dy)
            vx = jnp.abs(dx)
        vx = jnp.where(dx_valid, vx, 0.0)                  # drop row-seam columns
        # mean divisors and the final /2 are folded into static constants
        return acc + jnp.sum(vx) * inv_dx + jnp.sum(vy) * inv_dy

    n_chunks = tb // cs
    total = jnp.zeros((), jnp.float32)
    if n_chunks <= 8:                                      # fully visible to scheduler
        for t in range(n_chunks):
            total = chunk_sum(t * cs, total)
    else:
        def body(t, acc):
            return chunk_sum(pl.multiple_of(t * cs, cs), acc)
        total = jax.lax.fori_loop(0, n_chunks, body, total, unroll=2)

    # broadcast-accumulate: every element of this core's (8,128) tile holds its
    # running partial; the single cross-core sum happens in the wrapper.
    o_ref[...] += total


def gradient_loss(s, penalty="l2"):
    s = jnp.asarray(s)
    N, C, H, W = s.shape
    P = N * C
    L = H * W

    # Degenerate spatial dims: torch.mean over the empty diff tensor is NaN.
    if H < 2 or W < 2:
        return jnp.full((), jnp.nan, jnp.float32)

    x = s.reshape(P, L)                          # lane-dense view, no HBM copy

    itemsize = jnp.dtype(s.dtype).itemsize
    lpad = -(-L // 128) * 128                    # lane-padded flattened width
    plane_bytes = lpad * itemsize                # true VMEM footprint of one plane

    # ---- DMA plane-block sizing: ~8 MiB logical per block, tile-padding aware
    block_budget = 8 * 1024 * 1024
    tb = max(1, block_budget // max(plane_bytes, 1))
    if P < 8:
        tb = P                                   # block dim == full array dim is legal
    else:
        tb = max(8, (min(tb, P) // 8) * 8)       # multiple of 8, never beyond P

    # ---- in-kernel sub-chunk (register-resident compute): ~32 KiB of f32
    cs = max(1, (32 * 1024) // (lpad * 4))
    cs = max(8, (cs // 8) * 8)
    cs = min(cs, tb)
    tb = max(cs, (tb // cs) * cs)                # keep tb a multiple of cs

    nb = -(-P // tb)                             # number of plane blocks
    n_cores = 2 if nb >= 2 else 1                # v7x: one parallel slice per TC
    bpc = -(-nb // n_cores)                      # blocks per core (rectangular grid)
    needs_mask = (n_cores * bpc * tb) != P       # any padded / redundant planes?

    inv_dx = 0.5 / float(P * H * (W - 1))        # 0.5 * 1/numel(dx)
    inv_dy = 0.5 / float(P * (H - 1) * W)        # 0.5 * 1/numel(dy)

    kernel = functools.partial(
        _gradient_loss_kernel, W=W, L=L, P=P, tb=tb, cs=cs, bpc=bpc,
        penalty=penalty, inv_dx=inv_dx, inv_dy=inv_dy, needs_mask=needs_mask)

    if n_cores * bpc == nb:
        x_map = lambda c, i: (c * bpc + i, 0)
    else:                                        # clamp: no DMA ever reads past the array
        x_map = lambda c, i: (jnp.minimum(c * bpc + i, nb - 1), 0)

    block_bytes = tb * plane_bytes
    vmem_limit = min(max(48 * 1024 * 1024, int(2.5 * block_bytes) + (8 << 20)),
                     112 * 1024 * 1024)
    # TODO(synk): planes larger than ~1 MiB each would need lane-axis tiling
    # (with a W-column halo) to keep the double-buffered block under v7x's
    # 64 MiB physical VMEM; not needed for the shapes this loss is used with.

    out = pl.pallas_call(
        kernel,
        out_shape=jax.ShapeDtypeStruct((n_cores, 8, 128), jnp.float32),
        grid_spec=pltpu.PrefetchScalarGridSpec(
            num_scalar_prefetch=0,
            grid=(n_cores, bpc),
            in_specs=[pl.BlockSpec((tb, L), x_map)],
            out_specs=pl.BlockSpec((1, 8, 128), lambda c, i: (c, 0, 0)),
        ),
        compiler_params=pltpu.CompilerParams(
            dimension_semantics=("parallel", "arbitrary"),
            vmem_limit_bytes=vmem_limit,
        ),
        cost_estimate=pl.CostEstimate(
            flops=4 * P * L,
            transcendentals=0,
            bytes_accessed=P * L * itemsize + n_cores * 8 * 128 * 4,
        ),
    )(x)
    # one per-core partial each; single tiny cross-core reduction in the wrapper
    return jnp.sum(out[:, 0, 0])


def _reference(s, penalty="l2"):
    dy = jnp.abs(s[:, :, 1:, :] - s[:, :, :-1, :])
    dx = jnp.abs(s[:, :, :, 1:] - s[:, :, :, :-1])
    if penalty == "l2":
        dy = dy * dy
        dx = dx * dx
    return (jnp.mean(dx) + jnp.mean(dy)) / 2.0


if __name__ == "__main__":
    key = jax.random.PRNGKey(0)
    s = jax.random.normal(key, (2, 4, 16, 16), jnp.float32)

    loss_fn = jax.jit(gradient_loss, static_argnames="penalty")

    out_l2 = jax.block_until_ready(loss_fn(s, penalty="l2"))
    out_l1 = jax.block_until_ready(loss_fn(s, penalty="l1"))

    ref_l2 = _reference(s, "l2")
    ref_l1 = _reference(s, "l1")
    assert out_l2.shape == () and out_l2.dtype == jnp.float32
    assert jnp.allclose(out_l2, ref_l2, rtol=1e-5, atol=1e-6), (out_l2, ref_l2)
    assert jnp.allclose(out_l1, ref_l1, rtol=1e-5, atol=1e-6), (out_l1, ref_l1)
    print("KERNEL_OK")
</pallas_src>

<mosaic_0001>
module attributes {stable_mosaic.version = 11 : i64} {
  func.func @_gradient_loss_kernel(%arg0: i32, %arg1: i32, %arg2: memref<8x256xf32, #tpu.memory_space<vmem>>, %arg3: memref<1x8x128xf32, #tpu.memory_space<vmem>>) attributes {dimension_semantics = [#tpu.dimension_semantics<parallel>, #tpu.dimension_semantics<arbitrary>], iteration_bounds = array<i64: 1, 1>, scalar_prefetch = 0 : i64, scratch_operands = 0 : i64, tpu.core_type = #tpu.core_type<tc>, window_params = [{transform_indices = @transform_0, window_bounds = array<i64: 8, 256>}, {transform_indices = @transform_1, window_bounds = array<i64: 1, 8, 128>}]} {
    %c0_i32 = arith.constant 0 : i32
    %0 = arith.cmpi eq, %arg1, %c0_i32 : i32
    %1 = arith.extui %0 : i1 to i32
    %c0_i32_0 = arith.constant 0 : i32
    %2 = arith.cmpi ne, %1, %c0_i32_0 : i32
    scf.if %2 {
      %cst_19 = arith.constant 0.000000e+00 : f32
      %53 = vector.broadcast %cst_19 : f32 to vector<1x8x128xf32>
      %c0_20 = arith.constant 0 : index
      %c0_21 = arith.constant 0 : index
      %c0_22 = arith.constant 0 : index
      %54 = vector.load %arg3[%c0_20, %c0_21, %c0_22] : memref<1x8x128xf32, #tpu.memory_space<vmem>>, vector<1x8x128xf32>
      tpu.vector_store %arg3[%c0_20, %c0_21, %c0_22], %53 {strides = array<i32>} : memref<1x8x128xf32, #tpu.memory_space<vmem>>, vector<1x8x128xf32>,
    } else {
    }
    %3 = tpu.iota {dimensions = array<i32: 1>} : vector<1x255xi32>
    %c1_i32 = arith.constant 1 : i32
    %4 = vector.broadcast %c1_i32 : i32 to vector<1x255xi32>
    %5 = arith.addi %3, %4 : vector<1x255xi32>
    %c16_i32 = arith.constant 16 : i32
    %c0_i32_1 = arith.constant 0 : i32
    %6 = arith.cmpi eq, %c16_i32, %c0_i32_1 : i32
    %c1_i32_2 = arith.constant 1 : i32
    %7 = arith.select %6, %c1_i32_2, %c16_i32 : i32
    %8 = vector.broadcast %7 : i32 to vector<1x255xi32>
    %9 = arith.remsi %5, %8 : vector<1x255xi32>
    %c0_i32_3 = arith.constant 0 : i32
    %10 = vector.broadcast %c0_i32_3 : i32 to vector<1x255xi32>
    %11 = arith.cmpi ne, %9, %10 : vector<1x255xi32>
    %c0_i32_4 = arith.constant 0 : i32
    %12 = vector.broadcast %c0_i32_4 : i32 to vector<1x255xi32>
    %13 = arith.cmpi slt, %9, %12 : vector<1x255xi32>
    %c0_i32_5 = arith.constant 0 : i32
    %14 = arith.cmpi slt, %7, %c0_i32_5 : i32
    %15 = vector.broadcast %14 : i1 to vector<1x255xi1>
    %16 = vector.broadcast %15 : vector<1x255xi1> to vector<1x255xi1>
    %17 = arith.xori %13, %16 : vector<1x255xi1>
    %18 = arith.andi %17, %11 : vector<1x255xi1>
    %19 = vector.broadcast %7 : i32 to vector<1x255xi32>
    %20 = arith.addi %9, %19 : vector<1x255xi32>
    %21 = arith.select %18, %20, %9 : vector<1x255xi1>, vector<1x255xi32>
    %c0_i32_6 = arith.constant 0 : i32
    %22 = vector.broadcast %c0_i32_6 : i32 to vector<1x255xi32>
    %23 = arith.cmpi ne, %21, %22 : vector<1x255xi32>
    %c0 = arith.constant 0 : index
    %c0_7 = arith.constant 0 : index
    %24 = vector.load %arg2[%c0, %c0_7] : memref<8x256xf32, #tpu.memory_space<vmem>>, vector<8x256xf32>
    %25 = vector.extract_strided_slice %24 {offsets = [0, 16], sizes = [8, 240], strides = [1, 1]} : vector<8x256xf32> to vector<8x240xf32>
    %26 = vector.extract_strided_slice %24 {offsets = [0, 0], sizes = [8, 240], strides = [1, 1]} : vector<8x256xf32> to vector<8x240xf32>
    %27 = arith.subf %25, %26 : vector<8x240xf32>
    %28 = vector.extract_strided_slice %24 {offsets = [0, 1], sizes = [8, 255], strides = [1, 1]} : vector<8x256xf32> to vector<8x255xf32>
    %29 = vector.extract_strided_slice %24 {offsets = [0, 0], sizes = [8, 255], strides = [1, 1]} : vector<8x256xf32> to vector<8x255xf32>
    %30 = arith.subf %28, %29 : vector<8x255xf32>
    %31 = arith.mulf %27, %27 : vector<8x240xf32>
    %32 = arith.mulf %30, %30 : vector<8x255xf32>
    %cst = arith.constant 0.000000e+00 : f32
    %33 = vector.shape_cast %23 : vector<1x255xi1> to vector<1x255xi1>
    %34 = vector.broadcast %33 : vector<1x255xi1> to vector<8x255xi1>
    %35 = vector.broadcast %cst : f32 to vector<8x255xf32>
    %36 = arith.select %34, %32, %35 : vector<8x255xi1>, vector<8x255xf32>
    %37 = vector.shape_cast %36 : vector<8x255xf32> to vector<1x8x255xf32>
    %cst_8 = arith.constant dense<0.000000e+00> : vector<1xf32>
    %38 = vector.multi_reduction <add>, %37, %cst_8 [1, 2] : vector<1x8x255xf32> to vector<1xf32>
    %39 = vector.shape_cast %38 : vector<1xf32> to vector<1x1x1xf32>
    %40 = vector.extract %39[0, 0, 0] : f32 from vector<1x1x1xf32>
    %cst_9 = arith.constant 2.6041668E-4 : f32
    %41 = arith.mulf %40, %cst_9 : f32
    %cst_10 = arith.constant 0.000000e+00 : f32
    %42 = arith.addf %cst_10, %41 : f32
    %43 = vector.shape_cast %31 : vector<8x240xf32> to vector<1x8x240xf32>
    %cst_11 = arith.constant dense<0.000000e+00> : vector<1xf32>
    %44 = vector.multi_reduction <add>, %43, %cst_11 [1, 2] : vector<1x8x240xf32> to vector<1xf32>
    %45 = vector.shape_cast %44 : vector<1xf32> to vector<1x1x1xf32>
    %46 = vector.extract %45[0, 0, 0] : f32 from vector<1x1x1xf32>
    %cst_12 = arith.constant 2.6041668E-4 : f32
    %47 = arith.mulf %46, %cst_12 : f32
    %48 = arith.addf %42, %47 : f32
    %c0_13 = arith.constant 0 : index
    %c0_14 = arith.constant 0 : index
    %c0_15 = arith.constant 0 : index
    %49 = vector.load %arg3[%c0_13, %c0_14, %c0_15] : memref<1x8x128xf32, #tpu.memory_space<vmem>>, vector<1x8x128xf32>
    %50 = vector.broadcast %48 : f32 to vector<1x8x128xf32>
    %51 = arith.addf %49, %50 : vector<1x8x128xf32>
    %c0_16 = arith.constant 0 : index
    %c0_17 = arith.constant 0 : index
    %c0_18 = arith.constant 0 : index
    %52 = vector.load %arg3[%c0_16, %c0_17, %c0_18] : memref<1x8x128xf32, #tpu.memory_space<vmem>>, vector<1x8x128xf32>
    tpu.vector_store %arg3[%c0_16, %c0_17, %c0_18], %51 {strides = array<i32>} : memref<1x8x128xf32, #tpu.memory_space<vmem>>, vector<1x8x128xf32>,
    return
  }
  func.func @transform_0(%arg0: i32, %arg1: i32) -> (i32, i32) {
    %c1_i32 = arith.constant 1 : i32
    %0 = arith.muli %arg0, %c1_i32 : i32
    %1 = arith.addi %0, %arg1 : i32
    %c0_i32 = arith.constant 0 : i32
    %c0_i32_0 = arith.constant 0 : i32
    return %1, %c0_i32 : i32, i32
  }
  func.func @transform_1(%arg0: i32, %arg1: i32) -> (i32, i32, i32) {
    %c0_i32 = arith.constant 0 : i32
    %c0_i32_0 = arith.constant 0 : i32
    %c0_i32_1 = arith.constant 0 : i32
    return %arg0, %c0_i32, %c0_i32_0 : i32, i32, i32
  }
}

</mosaic_0001>

<llo_original>
// kernel: gradient_loss.1
$region0: #{gradient_loss.1}
  #allocation0 [shape = 'u32[]', space=smem, size = 0x4, offset = 0x4, fixed_abs, tag = 'smem constant byte address 0x4 - core index']
  #allocation1 [shape = 'u32[144,128]{1,0:T(1,128)}', space=vmem, size = 0x12000, scoped, tag = 'internal scratch']
  %s0 = inlined_call_operand.vmem [shape: f32[8,256], index: 0, kind: input, shape index: {}]
  %s1 = inlined_call_operand.vmem [shape: f32[1,8,128], index: 1, kind: output, shape index: {}]
  %s2 = sld [smem:[#allocation0]]
  $region18: #{gradient_loss.1} parent=0
    _
  %s4 = ssub.s32 1, %s2
  %s5 = scalar_select 0, %s4, %s2
  // Predicated region
  $region2: #{gradient_loss.1} parent=0 // pred_check
    _
  $region3: #{gradient_loss.1} parent=0 // pred_check_branch
    %7 = sbr.rel (0) target = $region5
  $region4: #{gradient_loss.1} parent=0 // pred_region
    %s8 = sadd.s32 0, 0
    %p9 = scmp.lt.s32.totalorder %s8, 0
    %s10 = scalar_select %p9, %s8, 0
    %s11 = smul.addr %s10, 2
    %s12 = smul.addr %s11, 8
    %s13 = scalar_lea.vmem %s0, %s12
    %s14 = sadd.s32 0, 0
  $region5: #{gradient_loss.1} parent=0 // pred_fallthru
    _
  %s15 = sadd.s32 0, 0
  %p16 = scmp.lt.s32.totalorder %s15, 0
  %s17 = scalar_select %p16, %s15, 0
  %s18 = smul.addr %s17, 2
  %s19 = smul.addr %s18, 8
  %s20 = scalar_lea.vmem %s0, %s19
  %s21 = sadd.s32 0, 0
  %p22 = scmp.lt.s32.totalorder %s21, 0
  %s23 = scalar_select %p22, %s21, 0
  %s24 = smul.addr %s23, 2
  %s25 = smul.addr %s24, 8
  %s26 = scalar_lea.vmem %s0, %s25
  %s27 = sadd.s32 0, 0
  %p28 = scmp.eq.s32.totalorder 0, 0
  // Predicated region
  $region6: #{gradient_loss.1} parent=0 // pred_check
    %p29 = pneg %p28
  $region7: #{gradient_loss.1} parent=0 // pred_check_branch
    %31 = sbr.rel (%p29) target = $region9
  $region8: #{gradient_loss.1} parent=0 // pred_region
    %32 = vst [vmem:[%s1] sm:$0xff] 0.0
  $region9: #{gradient_loss.1} parent=0 // pred_fallthru
    _
  %v33 = vlaneseq
  %v34 = vand.u32 %v33, 127
  %v35 = vadd.s32 %v34, 128
  %v36 = vadd.s32 %v34, 1
  %v37 = vadd.s32 %v35, 1
  %vm38 = vcmp.lt.s32.totalorder %v36, 0
  %v39 = vsub.s32 0, %v36
  %v40 = vsel %vm38, %v39, %v36
  %v41 = vshrl.u32 %v40, 4
  %v42 = vand.u32 %v40, 15
  %v43 = vsub.s32 0, %v42
  %v44 = vsel %vm38, %v43, %v42
  %vm45 = vcmp.lt.s32.totalorder %v37, 0
  %v46 = vsub.s32 0, %v37
  %v47 = vsel %vm45, %v46, %v37
  %v48 = vshrl.u32 %v47, 4
  %v49 = vand.u32 %v47, 15
  %v50 = vsub.s32 0, %v49
  %v51 = vsel %vm45, %v50, %v49
  %vm52 = vcmp.ne.s32.totalorder %v44, 0
  %vm53 = vcmp.ne.s32.totalorder %v51, 0
  %vm54 = vcmp.lt.s32.totalorder %v44, 0
  %vm55 = vcmp.lt.s32.totalorder %v51, 0
  %vm56 = vmand %vm54, %vm52
  %vm57 = vmand %vm55, %vm53
  %v58 = vadd.s32 %v44, 16
  %v59 = vadd.s32 %v51, 16
  %v60 = vsel %vm56, %v58, %v44
  %v61 = vsel %vm57, %v59, %v51
  %vm62 = vcmp.ne.s32.totalorder %v60, 0
  %vm63 = vcmp.ne.s32.totalorder %v61, 0
  %v64 = vld [vmem:[%s26] sm:$0xff]
  %v65 = vld [vmem:[%s26 + $0x8] sm:$0xff]
  %68 = vrot.lane.b32.xlu0 %v64, 16
  %v69 = vpop.permute.xlu0 %68
  %70 = vrot.lane.b32.xlu0 %v65, 16
  %v71 = vpop.permute.xlu0 %70
  %vm72 = vcmask 130048
  %v73 = vsel %vm72, %v69, %v71
  %v76 = vsub.f32 %v64, %v69
  %v77 = vsub.f32 %v65, %v73
  %78 = vrot.lane.b32.xlu0 %v64, 1
  %v79 = vpop.permute.xlu0 %78
  %80 = vrot.lane.b32.xlu0 %v65, 1
  %v81 = vpop.permute.xlu0 %80
  %vm82 = vcmask 7168
  %v83 = vsel %vm82, %v79, %v81
  %v86 = vsub.f32 %v64, %v79
  %v87 = vsub.f32 %v65, %v83
  %v88 = vmul.f32 %v76, %v76
  %v89 = vmul.f32 %v77, %v77
  %v90 = vmul.f32 %v86, %v86
  %v91 = vmul.f32 %v87, %v87
  %v92 = vsel %vm62, 1, 0
  %v93 = vsel %vm63, 1, 0
  %vm94 = vcmp.eq.s32.totalorder %v92, 1
  %vm95 = vcmp.eq.s32.totalorder %v93, 1
  %98 = vrot.lane.b32.xlu0 %v90, 127
  %v99 = vpop.permute.xlu0 %98
  %100 = vrot.lane.b32.xlu0 %v91, 127
  %v101 = vpop.permute.xlu0 %100
  %vm102 = vcmask 1039360
  %v103 = vsel %vm102, %v99, %v101
  %v106 = vsel %vm94, %v103, 0.0
  %v107 = vsel %vm95, %v101, 0.0
  %v108 = vsel %vm102, %v107, 0.0
  %v109 = vadd.f32 %v106, %v108
  %110 = vadd.xlane.f32.xlu0 %v109
  %v111 = vpop.xlane.xlu0 %110
  %v112 = vrot.slane %v111, 4
  %v113 = vadd.f32 %v111, %v112
  %v114 = vrot.slane %v113, 2
  %v115 = vadd.f32 %v113, %v114
  %v116 = vrot.slane %v115, 1
  %v117 = vadd.f32 %v115, %v116
  %s118 = vtos %v117
  %s119 = smul.f32 %s118, 0.00026041668
  %s120 = sadd.f32 %s119, 0.0
  %123 = vrot.lane.b32.xlu0 %v88, 112
  %v124 = vpop.permute.xlu0 %123
  %125 = vrot.lane.b32.xlu0 %v89, 112
  %v126 = vpop.permute.xlu0 %125
  %vm127 = vcmask 916480
  %v128 = vsel %vm127, %v124, %v126
  %v131 = vsel %vm127, %v126, 0.0
  %v132 = vadd.f32 %v128, %v131
  %133 = vadd.xlane.f32.xlu0 %v132
  %v134 = vpop.xlane.xlu0 %133
  %v135 = vrot.slane %v134, 4
  %v136 = vadd.f32 %v134, %v135
  %v137 = vrot.slane %v136, 2
  %v138 = vadd.f32 %v136, %v137
  %v139 = vrot.slane %v138, 1
  %v140 = vadd.f32 %v138, %v139
  %s141 = vtos %v140
  %s142 = smul.f32 %s141, 0.00026041668
  %s143 = sadd.f32 %s120, %s142
  %v144 = vld [vmem:[%s1] sm:$0xff]
  %v145 = vstv %s143
  %v146 = vadd.f32 %v144, %v145
  %147 = vst [vmem:[%s1] sm:$0xff] %v146
  // Predicated region
  $region10: #{gradient_loss.1} parent=0 // pred_check
    _
  $region11: #{gradient_loss.1} parent=0 // pred_check_branch
    %149 = sbr.rel (0) target = $region13
  $region12: #{gradient_loss.1} parent=0 // pred_region
    _
  $region13: #{gradient_loss.1} parent=0 // pred_fallthru
    _
  // Predicated region
  $region14: #{gradient_loss.1} parent=0 // pred_check
    _
  $region15: #{gradient_loss.1} parent=0 // pred_check_branch
    %151 = sbr.rel (0) target = $region17
  $region16: #{gradient_loss.1} parent=0 // pred_region
    _
  $region17: #{gradient_loss.1} parent=0 // pred_fallthru
    _

</llo_original>
